<compile_context>
chip_gen: v7x
topology: tpu7x:2x2x1
jax: 0.10.0
libtpu: 0.0.40
codegen_flags: <defaults>
</compile_context>

<pallas_src>
import functools

import jax
import jax.numpy as jnp
from jax.experimental import pallas as pl
from jax.experimental.pallas import tpu as pltpu

C1 = 0.01 ** 2
C2 = 0.03 ** 2


def _round_up(v, m):
    return ((v + m - 1) // m) * m


def _chip_budget():
    """(target input-block bytes, vmem_limit_bytes) per TPU generation.

    v5e / v6e have 128 MiB VMEM -> bigger blocks and a higher scoped limit;
    anything else (incl. v7x with only 64 MiB per TensorCore, or unknown
    backends) gets a conservative budget that is safe everywhere.
    """
    try:
        kind = jax.devices()[0].device_kind.lower()
    except Exception:  # pragma: no cover - unknown backend
        kind = ""
    if ("v5 lite" in kind) or ("v5e" in kind) or ("v6" in kind):
        return 2 << 20, 96 << 20
    return 1 << 20, 48 << 20


def _ssim_kernel(x_ref, y_ref, o_ref, *, w_valid):
    # x_ref / y_ref / o_ref: (Gblk, H, Wl) with Wl a multiple of 128.
    # Columns [w_valid, Wl) are zero padding; their outputs are discarded.
    Gb, H, Wl = x_ref.shape

    x = x_ref[...].astype(jnp.float32)
    y = y_ref[...].astype(jnp.float32)

    # Edge masks for the reflection fix-ups (hoisted; shared by every select).
    col = jax.lax.broadcasted_iota(jnp.int32, (Gb, H, Wl), 2)
    row = jax.lax.broadcasted_iota(jnp.int32, (Gb, H, Wl), 1)
    first_col = col == 0
    last_col = col == (w_valid - 1)
    first_row = row == 0
    last_row = row == (H - 1)

    def lane_halo(a):
        # a[..., j-1] / a[..., j+1] via XLU lane rotates; wraparound values are
        # replaced by the reflected neighbour at the two valid edge columns.
        prev = pltpu.roll(a, 1, axis=2)        # a[..., j-1] (wraps at j == 0)
        nxt = pltpu.roll(a, Wl - 1, axis=2)    # a[..., j+1] (wraps at the end)
        left = jnp.where(first_col, nxt, prev)   # reflect: col 0    -> a[..., 1]
        right = jnp.where(last_col, prev, nxt)   # reflect: col W-1  -> a[..., W-2]
        return left, right

    xl, xr = lane_halo(x)
    yl, yr = lane_halo(y)

    # Horizontal (lane) 3-tap raw sums of x, y, x^2, y^2, x*y.
    hx = xl + x + xr
    hy = yl + y + yr
    hxx = xl * xl + x * x + xr * xr
    hyy = yl * yl + y * y + yr * yr
    hxy = xl * yl + x * y + xr * yr

    def vsum(h):
        # Vertical (sublane) 3-tap raw sum with in-register row reflection.
        # TODO(synk): for H not a multiple of 8 the sublane roll may lower
        # suboptimally; a banded-matmul vertical pool (idle MXU) is the fallback.
        prev = pltpu.roll(h, 1, axis=1)        # h[:, i-1] (wraps at i == 0)
        nxt = pltpu.roll(h, H - 1, axis=1)     # h[:, i+1] (wraps at i == H-1)
        up = jnp.where(first_row, nxt, prev)     # reflect: row 0    -> h[:, 1]
        down = jnp.where(last_row, prev, nxt)    # reflect: row H-1  -> h[:, H-2]
        return up + h + down

    sx = vsum(hx)      # 9 * mu_x
    sy = vsum(hy)      # 9 * mu_y
    sxx = vsum(hxx)    # 9 * pool(x^2)
    syy = vsum(hyy)    # 9 * pool(y^2)
    sxy = vsum(hxy)    # 9 * pool(x*y)

    # SSIM with the /9, /81 normalizations folded into the constants: the
    # numerator/denominator below are 81^2 * the reference ones, so the ratio
    # (and hence the loss) is identical, and five full-block *1/9 multiplies go
    # away.
    sxsy = sx * sy
    sx2 = sx * sx
    sy2 = sy * sy
    c1s = jnp.float32(81.0 * C1)
    c2s = jnp.float32(81.0 * C2)
    n = (2.0 * sxsy + c1s) * (2.0 * (9.0 * sxy - sxsy) + c2s)
    d = (sx2 + sy2 + c1s) * (9.0 * (sxx + syy) - sx2 - sy2 + c2s)

    # EUP reciprocal estimate (otherwise-idle slot) + one Newton step to keep
    # ~f32 accuracy; d >= (81*C1)*(81*C2) > 0 so this is well-conditioned.
    r = pl.reciprocal(d, approx=True)
    r = r * (2.0 - d * r)
    out = 0.5 * (1.0 - n * r)
    o_ref[...] = jnp.clip(out, 0.0, 1.0).astype(o_ref.dtype)


def ssim_loss(x, y, *, target_block_bytes=None, vmem_limit_bytes=None):
    """x, y: (N, C, H, W). Returns the (N, C, H, W) SSIM loss map."""
    N, C, H, W = x.shape
    assert y.shape == x.shape
    assert H >= 2 and W >= 2, "reflection pad of 1 needs spatial dims >= 2"
    G = N * C
    W128 = _round_up(W, 128)

    default_block, default_vmem = _chip_budget()
    if target_block_bytes is None:
        target_block_bytes = default_block
    if vmem_limit_bytes is None:
        vmem_limit_bytes = default_vmem

    # (N, C, H, W) -> (G, H, W); lane-pad only when W is not already a
    # multiple of 128 (callers with 128-multiple widths pay no copy at all).
    xg = x.reshape(G, H, W)
    yg = y.reshape(G, H, W)
    if W128 != W:
        lane_pad = ((0, 0), (0, 0), (0, W128 - W))
        xg = jnp.pad(xg, lane_pad)
        yg = jnp.pad(yg, lane_pad)

    itemsize = jnp.dtype(x.dtype).itemsize
    in_bytes_per_image = H * W128 * itemsize
    f32_bytes_per_image = H * W128 * 4
    # Rough in-kernel VMEM footprint per image: ~24 live f32 full-block
    # temporaries + 3 arrays x 2 double-buffered pipeline buffers (I/O dtype).
    budget_per_image = 24 * f32_bytes_per_image + 6 * in_bytes_per_image

    gblk = max(1, target_block_bytes // in_bytes_per_image)
    gblk = min(gblk, max(1, (vmem_limit_bytes * 3 // 4) // budget_per_image))
    gblk = min(gblk, max(1, pl.cdiv(G, 4)))   # keep >= ~4 grid steps when possible
    gblk = int(gblk)

    Gpad = _round_up(G, gblk)
    if Gpad != G:
        gpad = ((0, Gpad - G), (0, 0), (0, 0))
        xg = jnp.pad(xg, gpad)   # all-zero extra images give loss 0 (discarded)
        yg = jnp.pad(yg, gpad)

    kernel = functools.partial(_ssim_kernel, w_valid=W)
    out = pl.pallas_call(
        kernel,
        out_shape=jax.ShapeDtypeStruct((Gpad, H, W128), x.dtype),
        grid_spec=pltpu.PrefetchScalarGridSpec(
            num_scalar_prefetch=0,
            grid=(Gpad // gblk,),
            in_specs=[
                pl.BlockSpec((gblk, H, W128), lambda g: (g, 0, 0)),
                pl.BlockSpec((gblk, H, W128), lambda g: (g, 0, 0)),
            ],
            out_specs=pl.BlockSpec((gblk, H, W128), lambda g: (g, 0, 0)),
        ),
        compiler_params=pltpu.CompilerParams(
            dimension_semantics=("parallel",),
            vmem_limit_bytes=vmem_limit_bytes,
        ),
    )(xg, yg)

    return out[:G, :, :W].reshape(N, C, H, W)


if __name__ == "__main__":
    key = jax.random.PRNGKey(0)
    kx, ky = jax.random.split(key)
    N, C, H, W = 2, 4, 16, 16
    x = jax.random.uniform(kx, (N, C, H, W), dtype=jnp.float32)
    y = jax.random.uniform(ky, (N, C, H, W), dtype=jnp.float32)

    out = jax.jit(ssim_loss)(x, y)
    jax.block_until_ready(out)

    # Pure-JAX reference of the same math (reflection pad + 3x3 mean pools).
    def ref(x, y):
        pad = ((0, 0), (0, 0), (1, 1), (1, 1))
        xp = jnp.pad(x, pad, mode="reflect")
        yp = jnp.pad(y, pad, mode="reflect")

        def pool(a):
            acc = a[:, :, 0:H, 0:W]
            for di in range(3):
                for dj in range(3):
                    if di == 0 and dj == 0:
                        continue
                    acc = acc + a[:, :, di:di + H, dj:dj + W]
            return acc / 9.0

        mu_x, mu_y = pool(xp), pool(yp)
        sx = pool(xp * xp) - mu_x ** 2
        sy = pool(yp * yp) - mu_y ** 2
        sxy = pool(xp * yp) - mu_x * mu_y
        n = (2 * mu_x * mu_y + C1) * (2 * sxy + C2)
        d = (mu_x ** 2 + mu_y ** 2 + C1) * (sx + sy + C2)
        return jnp.clip((1 - n / d) / 2, 0.0, 1.0)

    r = ref(x, y)
    assert out.shape == (N, C, H, W)
    err = float(jnp.max(jnp.abs(out - r)))
    # Tolerance slightly looser than before: the EUP approx-reciprocal + one
    # Newton step and the rescaled-constant algebra round differently.
    assert err < 2e-4, f"max abs err {err}"
    print("KERNEL_OK")
</pallas_src>

<mosaic_0001>
module attributes {stable_mosaic.version = 11 : i64} {
  func.func @_ssim_kernel(%arg0: i32, %arg1: memref<2x16x128xf32, #tpu.memory_space<vmem>>, %arg2: memref<2x16x128xf32, #tpu.memory_space<vmem>>, %arg3: memref<2x16x128xf32, #tpu.memory_space<vmem>>) attributes {dimension_semantics = [#tpu.dimension_semantics<parallel>], iteration_bounds = array<i64: 4>, scalar_prefetch = 0 : i64, scratch_operands = 0 : i64, tpu.core_type = #tpu.core_type<tc>, window_params = [{transform_indices = @transform_0, window_bounds = array<i64: 2, 16, 128>}, {transform_indices = @transform_1, window_bounds = array<i64: 2, 16, 128>}, {transform_indices = @transform_2, window_bounds = array<i64: 2, 16, 128>}]} {
    %c0 = arith.constant 0 : index
    %c0_0 = arith.constant 0 : index
    %c0_1 = arith.constant 0 : index
    %0 = vector.load %arg1[%c0, %c0_0, %c0_1] : memref<2x16x128xf32, #tpu.memory_space<vmem>>, vector<2x16x128xf32>
    %c0_2 = arith.constant 0 : index
    %c0_3 = arith.constant 0 : index
    %c0_4 = arith.constant 0 : index
    %1 = vector.load %arg2[%c0_2, %c0_3, %c0_4] : memref<2x16x128xf32, #tpu.memory_space<vmem>>, vector<2x16x128xf32>
    %2 = tpu.iota {dimensions = array<i32: 2>} : vector<2x16x128xi32>
    %3 = tpu.iota {dimensions = array<i32: 1>} : vector<2x16x128xi32>
    %c0_i32 = arith.constant 0 : i32
    %4 = vector.broadcast %c0_i32 : i32 to vector<2x16x128xi32>
    %5 = arith.cmpi eq, %2, %4 : vector<2x16x128xi32>
    %c15_i32 = arith.constant 15 : i32
    %6 = vector.broadcast %c15_i32 : i32 to vector<2x16x128xi32>
    %7 = arith.cmpi eq, %2, %6 : vector<2x16x128xi32>
    %c0_i32_5 = arith.constant 0 : i32
    %8 = vector.broadcast %c0_i32_5 : i32 to vector<2x16x128xi32>
    %9 = arith.cmpi eq, %3, %8 : vector<2x16x128xi32>
    %c15_i32_6 = arith.constant 15 : i32
    %10 = vector.broadcast %c15_i32_6 : i32 to vector<2x16x128xi32>
    %11 = arith.cmpi eq, %3, %10 : vector<2x16x128xi32>
    %c1_i32 = arith.constant 1 : i32
    %12 = tpu.dynamic_rotate %0 by %c1_i32 dim 2 : vector<2x16x128xf32>, i32 -> vector<2x16x128xf32>
    %c127_i32 = arith.constant 127 : i32
    %13 = tpu.dynamic_rotate %0 by %c127_i32 dim 2 : vector<2x16x128xf32>, i32 -> vector<2x16x128xf32>
    %14 = arith.select %5, %13, %12 : vector<2x16x128xi1>, vector<2x16x128xf32>
    %15 = arith.select %7, %12, %13 : vector<2x16x128xi1>, vector<2x16x128xf32>
    %c1_i32_7 = arith.constant 1 : i32
    %16 = tpu.dynamic_rotate %1 by %c1_i32_7 dim 2 : vector<2x16x128xf32>, i32 -> vector<2x16x128xf32>
    %c127_i32_8 = arith.constant 127 : i32
    %17 = tpu.dynamic_rotate %1 by %c127_i32_8 dim 2 : vector<2x16x128xf32>, i32 -> vector<2x16x128xf32>
    %18 = arith.select %5, %17, %16 : vector<2x16x128xi1>, vector<2x16x128xf32>
    %19 = arith.select %7, %16, %17 : vector<2x16x128xi1>, vector<2x16x128xf32>
    %20 = arith.addf %14, %0 : vector<2x16x128xf32>
    %21 = arith.addf %20, %15 : vector<2x16x128xf32>
    %22 = arith.addf %18, %1 : vector<2x16x128xf32>
    %23 = arith.addf %22, %19 : vector<2x16x128xf32>
    %24 = arith.mulf %14, %14 : vector<2x16x128xf32>
    %25 = arith.mulf %0, %0 : vector<2x16x128xf32>
    %26 = arith.addf %24, %25 : vector<2x16x128xf32>
    %27 = arith.mulf %15, %15 : vector<2x16x128xf32>
    %28 = arith.addf %26, %27 : vector<2x16x128xf32>
    %29 = arith.mulf %18, %18 : vector<2x16x128xf32>
    %30 = arith.mulf %1, %1 : vector<2x16x128xf32>
    %31 = arith.addf %29, %30 : vector<2x16x128xf32>
    %32 = arith.mulf %19, %19 : vector<2x16x128xf32>
    %33 = arith.addf %31, %32 : vector<2x16x128xf32>
    %34 = arith.mulf %14, %18 : vector<2x16x128xf32>
    %35 = arith.mulf %0, %1 : vector<2x16x128xf32>
    %36 = arith.addf %34, %35 : vector<2x16x128xf32>
    %37 = arith.mulf %15, %19 : vector<2x16x128xf32>
    %38 = arith.addf %36, %37 : vector<2x16x128xf32>
    %c1_i32_9 = arith.constant 1 : i32
    %39 = tpu.dynamic_rotate %21 by %c1_i32_9 dim 1 : vector<2x16x128xf32>, i32 -> vector<2x16x128xf32>
    %c15_i32_10 = arith.constant 15 : i32
    %40 = tpu.dynamic_rotate %21 by %c15_i32_10 dim 1 : vector<2x16x128xf32>, i32 -> vector<2x16x128xf32>
    %41 = arith.select %9, %40, %39 : vector<2x16x128xi1>, vector<2x16x128xf32>
    %42 = arith.select %11, %39, %40 : vector<2x16x128xi1>, vector<2x16x128xf32>
    %43 = arith.addf %41, %21 : vector<2x16x128xf32>
    %44 = arith.addf %43, %42 : vector<2x16x128xf32>
    %c1_i32_11 = arith.constant 1 : i32
    %45 = tpu.dynamic_rotate %23 by %c1_i32_11 dim 1 : vector<2x16x128xf32>, i32 -> vector<2x16x128xf32>
    %c15_i32_12 = arith.constant 15 : i32
    %46 = tpu.dynamic_rotate %23 by %c15_i32_12 dim 1 : vector<2x16x128xf32>, i32 -> vector<2x16x128xf32>
    %47 = arith.select %9, %46, %45 : vector<2x16x128xi1>, vector<2x16x128xf32>
    %48 = arith.select %11, %45, %46 : vector<2x16x128xi1>, vector<2x16x128xf32>
    %49 = arith.addf %47, %23 : vector<2x16x128xf32>
    %50 = arith.addf %49, %48 : vector<2x16x128xf32>
    %c1_i32_13 = arith.constant 1 : i32
    %51 = tpu.dynamic_rotate %28 by %c1_i32_13 dim 1 : vector<2x16x128xf32>, i32 -> vector<2x16x128xf32>
    %c15_i32_14 = arith.constant 15 : i32
    %52 = tpu.dynamic_rotate %28 by %c15_i32_14 dim 1 : vector<2x16x128xf32>, i32 -> vector<2x16x128xf32>
    %53 = arith.select %9, %52, %51 : vector<2x16x128xi1>, vector<2x16x128xf32>
    %54 = arith.select %11, %51, %52 : vector<2x16x128xi1>, vector<2x16x128xf32>
    %55 = arith.addf %53, %28 : vector<2x16x128xf32>
    %56 = arith.addf %55, %54 : vector<2x16x128xf32>
    %c1_i32_15 = arith.constant 1 : i32
    %57 = tpu.dynamic_rotate %33 by %c1_i32_15 dim 1 : vector<2x16x128xf32>, i32 -> vector<2x16x128xf32>
    %c15_i32_16 = arith.constant 15 : i32
    %58 = tpu.dynamic_rotate %33 by %c15_i32_16 dim 1 : vector<2x16x128xf32>, i32 -> vector<2x16x128xf32>
    %59 = arith.select %9, %58, %57 : vector<2x16x128xi1>, vector<2x16x128xf32>
    %60 = arith.select %11, %57, %58 : vector<2x16x128xi1>, vector<2x16x128xf32>
    %61 = arith.addf %59, %33 : vector<2x16x128xf32>
    %62 = arith.addf %61, %60 : vector<2x16x128xf32>
    %c1_i32_17 = arith.constant 1 : i32
    %63 = tpu.dynamic_rotate %38 by %c1_i32_17 dim 1 : vector<2x16x128xf32>, i32 -> vector<2x16x128xf32>
    %c15_i32_18 = arith.constant 15 : i32
    %64 = tpu.dynamic_rotate %38 by %c15_i32_18 dim 1 : vector<2x16x128xf32>, i32 -> vector<2x16x128xf32>
    %65 = arith.select %9, %64, %63 : vector<2x16x128xi1>, vector<2x16x128xf32>
    %66 = arith.select %11, %63, %64 : vector<2x16x128xi1>, vector<2x16x128xf32>
    %67 = arith.addf %65, %38 : vector<2x16x128xf32>
    %68 = arith.addf %67, %66 : vector<2x16x128xf32>
    %69 = arith.mulf %44, %50 : vector<2x16x128xf32>
    %70 = arith.mulf %44, %44 : vector<2x16x128xf32>
    %71 = arith.mulf %50, %50 : vector<2x16x128xf32>
    %cst = arith.constant 2.000000e+00 : f32
    %72 = vector.broadcast %cst : f32 to vector<2x16x128xf32>
    %73 = arith.mulf %72, %69 : vector<2x16x128xf32>
    %cst_19 = arith.constant 8.100000e-03 : f32
    %74 = vector.broadcast %cst_19 : f32 to vector<2x16x128xf32>
    %75 = arith.addf %73, %74 : vector<2x16x128xf32>
    %cst_20 = arith.constant 9.000000e+00 : f32
    %76 = vector.broadcast %cst_20 : f32 to vector<2x16x128xf32>
    %77 = arith.mulf %76, %68 : vector<2x16x128xf32>
    %78 = arith.subf %77, %69 : vector<2x16x128xf32>
    %cst_21 = arith.constant 2.000000e+00 : f32
    %79 = vector.broadcast %cst_21 : f32 to vector<2x16x128xf32>
    %80 = arith.mulf %79, %78 : vector<2x16x128xf32>
    %cst_22 = arith.constant 7.290000e-02 : f32
    %81 = vector.broadcast %cst_22 : f32 to vector<2x16x128xf32>
    %82 = arith.addf %80, %81 : vector<2x16x128xf32>
    %83 = arith.mulf %75, %82 : vector<2x16x128xf32>
    %84 = arith.addf %70, %71 : vector<2x16x128xf32>
    %cst_23 = arith.constant 8.100000e-03 : f32
    %85 = vector.broadcast %cst_23 : f32 to vector<2x16x128xf32>
    %86 = arith.addf %84, %85 : vector<2x16x128xf32>
    %87 = arith.addf %56, %62 : vector<2x16x128xf32>
    %cst_24 = arith.constant 9.000000e+00 : f32
    %88 = vector.broadcast %cst_24 : f32 to vector<2x16x128xf32>
    %89 = arith.mulf %88, %87 : vector<2x16x128xf32>
    %90 = arith.subf %89, %70 : vector<2x16x128xf32>
    %91 = arith.subf %90, %71 : vector<2x16x128xf32>
    %cst_25 = arith.constant 7.290000e-02 : f32
    %92 = vector.broadcast %cst_25 : f32 to vector<2x16x128xf32>
    %93 = arith.addf %91, %92 : vector<2x16x128xf32>
    %94 = arith.mulf %86, %93 : vector<2x16x128xf32>
    %95 = tpu.reciprocal %94 {approx = true} : vector<2x16x128xf32> -> vector<2x16x128xf32>
    %96 = arith.mulf %94, %95 : vector<2x16x128xf32>
    %cst_26 = arith.constant 2.000000e+00 : f32
    %97 = vector.broadcast %cst_26 : f32 to vector<2x16x128xf32>
    %98 = arith.subf %97, %96 : vector<2x16x128xf32>
    %99 = arith.mulf %95, %98 : vector<2x16x128xf32>
    %100 = arith.mulf %83, %99 : vector<2x16x128xf32>
    %cst_27 = arith.constant 1.000000e+00 : f32
    %101 = vector.broadcast %cst_27 : f32 to vector<2x16x128xf32>
    %102 = arith.subf %101, %100 : vector<2x16x128xf32>
    %cst_28 = arith.constant 5.000000e-01 : f32
    %103 = vector.broadcast %cst_28 : f32 to vector<2x16x128xf32>
    %104 = arith.mulf %103, %102 : vector<2x16x128xf32>
    %cst_29 = arith.constant 0.000000e+00 : f32
    %cst_30 = arith.constant 1.000000e+00 : f32
    %105 = vector.broadcast %cst_29 : f32 to vector<2x16x128xf32>
    %106 = arith.maximumf %105, %104 : vector<2x16x128xf32>
    %107 = vector.broadcast %cst_30 : f32 to vector<2x16x128xf32>
    %108 = arith.minimumf %107, %106 : vector<2x16x128xf32>
    %c0_31 = arith.constant 0 : index
    %c0_32 = arith.constant 0 : index
    %c0_33 = arith.constant 0 : index
    %109 = vector.load %arg3[%c0_31, %c0_32, %c0_33] : memref<2x16x128xf32, #tpu.memory_space<vmem>>, vector<2x16x128xf32>
    tpu.vector_store %arg3[%c0_31, %c0_32, %c0_33], %108 {strides = array<i32>} : memref<2x16x128xf32, #tpu.memory_space<vmem>>, vector<2x16x128xf32>,
    return
  }
  func.func @transform_0(%arg0: i32) -> (i32, i32, i32) {
    %c0_i32 = arith.constant 0 : i32
    %c0_i32_0 = arith.constant 0 : i32
    %c0_i32_1 = arith.constant 0 : i32
    return %arg0, %c0_i32, %c0_i32_0 : i32, i32, i32
  }
  func.func @transform_1(%arg0: i32) -> (i32, i32, i32) {
    %c0_i32 = arith.constant 0 : i32
    %c0_i32_0 = arith.constant 0 : i32
    %c0_i32_1 = arith.constant 0 : i32
    return %arg0, %c0_i32, %c0_i32_0 : i32, i32, i32
  }
  func.func @transform_2(%arg0: i32) -> (i32, i32, i32) {
    %c0_i32 = arith.constant 0 : i32
    %c0_i32_0 = arith.constant 0 : i32
    %c0_i32_1 = arith.constant 0 : i32
    return %arg0, %c0_i32, %c0_i32_0 : i32, i32, i32
  }
}

</mosaic_0001>

<llo_original>
// kernel: ssim_loss.1
$region0: #{ssim_loss.1}
  #allocation0 [shape = 'u32[]', space=smem, size = 0x4, offset = 0x4, fixed_abs, tag = 'smem constant byte address 0x4 - core index']
  #allocation1 [shape = 'u32[144,128]{1,0:T(1,128)}', space=vmem, size = 0x12000, scoped, tag = 'internal scratch']
  %s0 = inlined_call_operand.vmem [shape: f32[8,16,128], index: 0, kind: input, shape index: {}]
  %s1 = inlined_call_operand.vmem [shape: f32[8,16,128], index: 1, kind: input, shape index: {}]
  %s2 = inlined_call_operand.hbm [shape: f32[8,16,128], index: 2, kind: output, shape index: {}]
  %s3 = sld [smem:[#allocation0]]
  $region41: #{ssim_loss.1} parent=0
    _
  %s5 = ssub.s32 1, %s3
  %s6 = scalar_select 0, %s5, %s3
  $region1: #{ssim_loss.1} parent=0
    #allocation2 [shape = 'u8[32768]{0}', space=vmem, size = 0x8000, scoped, tag = 'output window, operand 0']
    #allocation3 [shape = 's32[2]{0}', space=sflag, size = 0x8, scoped, tag = 'scoped memory for ssim_loss.1']
    %7 = vsyncpa [#allocation3], 0
    %s8 = scalar_lea.sflag [#allocation3], 1
    %9 = vsyncpa %s8, 0
    loop: start=0, step=1, limit=6
    $region2: #{ssim_loss.1} parent=1 // loop_pre_header
      _
    $region3: #{ssim_loss.1} parent=1 // loop_header
      %s11 = sphi 0, %s15
      %p12 = scmp.ge.s32.totalorder %s11, 6
      %s21 = sphi 0, %s23
      %s24 = sphi 0, %s21
      %s25 = sphi 0, %s24
      %s41 = sphi 0, %s25
      %s47 = sphi 0, %s49
      %s50 = sphi 0, %s47
      %s51 = sphi 0, %s50
      %s67 = sphi 0, %s51
      %s73 = sphi 0, %s75
      %s76 = sphi 0, %s73
      %s77 = sphi 0, %s76
      %s93 = sphi 0, %s77
    $region4: #{ssim_loss.1} parent=1 // loop_header_branch
      %14 = sbr.rel (%p12) target = $region8
    $region5: #{ssim_loss.1} parent=1 // loop_body
      %s16 = ssub.s32 %s11, 1
      %s17 = ssub.s32 %s11, 2
      %s18 = sadd.s32 %s11, 1
      %s19 = ssub.s32 %s11, %s18
      %p20 = scmp.eq.s32.totalorder %s19, 0
      %s22 = sadd.s32 %s21, 1
      %s23 = scalar_select %p20, %s21, %s22
      %p26 = pneg %p20
      %p27 = scmp.eq.s32.totalorder %s11, 3
      %p28 = por %p26, %p27
      %p29 = scmp.ne.s32.totalorder %s21, %s24
      %p30 = scmp.eq.s32.totalorder %s11, 0
      %p31 = por %p29, %p30
      %p32 = scmp.ne.s32.totalorder %s21, %s24
      %p33 = scmp.eq.s32.totalorder %s16, 3
      %p34 = por %p32, %p33
      %p35 = scmp.ne.s32.totalorder %s24, %s25
      %p36 = scmp.eq.s32.totalorder %s16, 0
      %p37 = por %p35, %p36
      %p38 = scmp.ne.s32.totalorder %s24, %s25
      %p39 = scmp.eq.s32.totalorder %s17, 3
      %p40 = por %p38, %p39
      %p42 = scmp.ne.s32.totalorder %s25, %s41
      %p43 = scmp.eq.s32.totalorder %s17, 0
      %p44 = por %p42, %p43
      %s45 = ssub.s32 %s11, %s18
      %p46 = scmp.eq.s32.totalorder %s45, 0
      %s48 = sadd.s32 %s47, 1
      %s49 = scalar_select %p46, %s47, %s48
      %p52 = pneg %p46
      %p53 = scmp.eq.s32.totalorder %s11, 3
      %p54 = por %p52, %p53
      %p55 = scmp.ne.s32.totalorder %s47, %s50
      %p56 = scmp.eq.s32.totalorder %s11, 0
      %p57 = por %p55, %p56
      %p58 = scmp.ne.s32.totalorder %s47, %s50
      %p59 = scmp.eq.s32.totalorder %s16, 3
      %p60 = por %p58, %p59
      %p61 = scmp.ne.s32.totalorder %s50, %s51
      %p62 = scmp.eq.s32.totalorder %s16, 0
      %p63 = por %p61, %p62
      %p64 = scmp.ne.s32.totalorder %s50, %s51
      %p65 = scmp.eq.s32.totalorder %s17, 3
      %p66 = por %p64, %p65
      %p68 = scmp.ne.s32.totalorder %s51, %s67
      %p69 = scmp.eq.s32.totalorder %s17, 0
      %p70 = por %p68, %p69
      %s71 = ssub.s32 %s11, %s18
      %p72 = scmp.eq.s32.totalorder %s71, 0
      %s74 = sadd.s32 %s73, 1
      %s75 = scalar_select %p72, %s73, %s74
      %p78 = pneg %p72
      %p79 = scmp.eq.s32.totalorder %s11, 3
      %p80 = por %p78, %p79
      %p81 = scmp.ne.s32.totalorder %s73, %s76
      %p82 = scmp.eq.s32.totalorder %s11, 0
      %p83 = por %p81, %p82
      %p84 = scmp.ne.s32.totalorder %s73, %s76
      %p85 = scmp.eq.s32.totalorder %s16, 3
      %p86 = por %p84, %p85
      %p87 = scmp.ne.s32.totalorder %s76, %s77
      %p88 = scmp.eq.s32.totalorder %s16, 0
      %p89 = por %p87, %p88
      %p90 = scmp.ne.s32.totalorder %s76, %s77
      %p91 = scmp.eq.s32.totalorder %s17, 3
      %p92 = por %p90, %p91
      %p94 = scmp.ne.s32.totalorder %s77, %s93
      %p95 = scmp.eq.s32.totalorder %s17, 0
      %p96 = por %p94, %p95
      %p97 = scmp.le.s32.totalorder 1, %s11
      %p98 = scmp.lt.s32.totalorder %s11, 5
      %p99 = pnand %p97, %p98
      %p100 = pneg %p99
      // Predicated region
      $region9: #{ssim_loss.1} parent=5 // pred_check
        _
      $region10: #{ssim_loss.1} parent=5 // pred_check_branch
        %102 = sbr.rel (%p99) target = $region12
      $region11: #{ssim_loss.1} parent=5 // pred_region
        %s103 = ssub.s32 %s11, 1
      $region12: #{ssim_loss.1} parent=5 // pred_fallthru
        _
      %p104 = scmp.lt.s32.totalorder %s11, 4
      // Predicated region
      $region13: #{ssim_loss.1} parent=5 // pred_check
        %p105 = pneg %p104
      $region14: #{ssim_loss.1} parent=5 // pred_check_branch
        %107 = sbr.rel (%p105) target = $region16
      $region15: #{ssim_loss.1} parent=5 // pred_region
        // Predicated region
        $region17: #{ssim_loss.1} parent=15 // pred_check
          %p108 = pneg %p31
        $region18: #{ssim_loss.1} parent=15 // pred_check_branch
          %110 = sbr.rel (%p108) target = $region20
        $region19: #{ssim_loss.1} parent=15 // pred_region
          %s111 = smul.u32 2, %s11
          %p112 = scmp.lt.s32.totalorder %s111, 7
          %s113 = scalar_select %p112, %s111, 7
          %s114 = smul.addr %s113, 2
          %s115 = smul.addr %s114, 8
          %s116 = scalar_lea.vmem %s0, %s115
          %s117 = smul.u32 2, %s11
        $region20: #{ssim_loss.1} parent=15 // pred_fallthru
          _
        // Predicated region
        $region21: #{ssim_loss.1} parent=15 // pred_check
          %p118 = pneg %p57
        $region22: #{ssim_loss.1} parent=15 // pred_check_branch
          %120 = sbr.rel (%p118) target = $region24
        $region23: #{ssim_loss.1} parent=15 // pred_region
          %s121 = smul.u32 2, %s11
          %p122 = scmp.lt.s32.totalorder %s121, 7
          %s123 = scalar_select %p122, %s121, 7
          %s124 = smul.addr %s123, 2
          %s125 = smul.addr %s124, 8
          %s126 = scalar_lea.vmem %s1, %s125
          %s127 = smul.u32 2, %s11
        $region24: #{ssim_loss.1} parent=15 // pred_fallthru
          _
      $region16: #{ssim_loss.1} parent=5 // pred_fallthru
        _
      %p128 = scmp.le.s32.totalorder 1, %s11
      %p129 = scmp.lt.s32.totalorder %s11, 5
      %p130 = pnand %p128, %p129
      %p131 = pneg %p130
      // Predicated region
      $region25: #{ssim_loss.1} parent=5 // pred_check
        _
      $region26: #{ssim_loss.1} parent=5 // pred_check_branch
        %133 = sbr.rel (%p130) target = $region28
      $region27: #{ssim_loss.1} parent=5 // pred_region
        %s134 = ssub.s32 %s11, 1
        %s135 = smul.u32 2, %s16
        %p136 = scmp.lt.s32.totalorder %s135, 7
        %s137 = scalar_select %p136, %s135, 7
        %s138 = smul.addr %s137, 2
        %s139 = smul.addr %s138, 8
        %s140 = scalar_lea.vmem %s0, %s139
        %p141 = pneg %p37
        %p142 = pneg %p34
        %s143 = smul.u32 2, %s16
        %p144 = scmp.lt.s32.totalorder %s143, 7
        %s145 = scalar_select %p144, %s143, 7
        %s146 = smul.addr %s145, 2
        %s147 = smul.addr %s146, 8
        %s148 = scalar_lea.vmem %s1, %s147
        %p149 = pneg %p63
        %p150 = pneg %p60
        %p151 = pneg %p89
        %p152 = pneg %p86
        %s153 = sand.u32 %s76, 1
        %s154 = scalar_lea.sflag [#allocation3], %s153
        %s155 = sand.u32 %s76, 1
        %s156 = smul.addr %s155, 32
        %s157 = scalar_lea.vmem [#allocation2], %s156
        %s158 = smul.u32 2, %s16
        %p159 = scmp.lt.s32.totalorder %s158, 7
        %s160 = scalar_select %p159, %s158, 7
        %s161 = smul.addr %s160, 2
        %s162 = smul.addr %s161, 8
        %s163 = scalar_lea.vmem %s0, %s162
        %s164 = smul.u32 2, %s16
        %s165 = smul.u32 2, %s16
        %p166 = scmp.lt.s32.totalorder %s165, 7
        %s167 = scalar_select %p166, %s165, 7
        %s168 = smul.addr %s167, 2
        %s169 = smul.addr %s168, 8
        %s170 = scalar_lea.vmem %s1, %s169
        %s171 = smul.u32 2, %s16
        %s172 = smul.u32 2, %s16
        %v173 = vld [vmem:[%s163] sm:$0xff]
        %v174 = vld [vmem:[%s163 + $0x8] sm:$0xff]
        %v175 = vld [vmem:[%s163 + $0x10] sm:$0xff]
        %v176 = vld [vmem:[%s163 + $0x18] sm:$0xff]
        %v177 = vld [vmem:[%s170] sm:$0xff]
        %v178 = vld [vmem:[%s170 + $0x8] sm:$0xff]
        %v179 = vld [vmem:[%s170 + $0x10] sm:$0xff]
        %v180 = vld [vmem:[%s170 + $0x18] sm:$0xff]
        %v181 = vlaneseq
        %v182 = vand.u32 %v181, 127
        %v183 = vlaneseq
        %v184 = vshrl.u32 %v183, 7
        %v185 = vadd.s32 %v184, 8
        %vm186 = vcmp.eq.s32.totalorder %v182, 0
        %vm187 = vcmp.eq.s32.totalorder %v182, 15
        %vm188 = vcmp.eq.s32.totalorder %v184, 0
        %vm189 = vcmp.eq.s32.totalorder %v185, 0
        %vm190 = vcmp.eq.s32.totalorder %v184, 15
        %vm191 = vcmp.eq.s32.totalorder %v185, 15
        %192 = vrot.lane.b32.xlu0 %v173, 1
        %v193 = vpop.permute.xlu0 %192
        %194 = vrot.lane.b32.xlu0 %v174, 1
        %v195 = vpop.permute.xlu0 %194
        %196 = vrot.lane.b32.xlu0 %v175, 1
        %v197 = vpop.permute.xlu0 %196
        %198 = vrot.lane.b32.xlu0 %v176, 1
        %v199 = vpop.permute.xlu0 %198
        %200 = vrot.lane.b32.xlu0 %v173, 127
        %v201 = vpop.permute.xlu0 %200
        %202 = vrot.lane.b32.xlu0 %v174, 127
        %v203 = vpop.permute.xlu0 %202
        %204 = vrot.lane.b32.xlu0 %v175, 127
        %v205 = vpop.permute.xlu0 %204
        %206 = vrot.lane.b32.xlu0 %v176, 127
        %v207 = vpop.permute.xlu0 %206
        %v208 = vsel %vm186, %v201, %v193
        %v209 = vsel %vm186, %v203, %v195
        %v210 = vsel %vm186, %v205, %v197
        %v211 = vsel %vm186, %v207, %v199
        %v212 = vsel %vm187, %v193, %v201
        %v213 = vsel %vm187, %v195, %v203
        %v214 = vsel %vm187, %v197, %v205
        %v215 = vsel %vm187, %v199, %v207
        %216 = vrot.lane.b32.xlu0 %v177, 1
        %v217 = vpop.permute.xlu0 %216
        %218 = vrot.lane.b32.xlu0 %v178, 1
        %v219 = vpop.permute.xlu0 %218
        %220 = vrot.lane.b32.xlu0 %v179, 1
        %v221 = vpop.permute.xlu0 %220
        %222 = vrot.lane.b32.xlu0 %v180, 1
        %v223 = vpop.permute.xlu0 %222
        %224 = vrot.lane.b32.xlu0 %v177, 127
        %v225 = vpop.permute.xlu0 %224
        %226 = vrot.lane.b32.xlu0 %v178, 127
        %v227 = vpop.permute.xlu0 %226
        %228 = vrot.lane.b32.xlu0 %v179, 127
        %v229 = vpop.permute.xlu0 %228
        %230 = vrot.lane.b32.xlu0 %v180, 127
        %v231 = vpop.permute.xlu0 %230
        %v232 = vsel %vm186, %v225, %v217
        %v233 = vsel %vm186, %v227, %v219
        %v234 = vsel %vm186, %v229, %v221
        %v235 = vsel %vm186, %v231, %v223
        %v236 = vsel %vm187, %v217, %v225
        %v237 = vsel %vm187, %v219, %v227
        %v238 = vsel %vm187, %v221, %v229
        %v239 = vsel %vm187, %v223, %v231
        %v240 = vadd.f32 %v208, %v173
        %v241 = vadd.f32 %v209, %v174
        %v242 = vadd.f32 %v210, %v175
        %v243 = vadd.f32 %v211, %v176
        %v244 = vadd.f32 %v240, %v212
        %v245 = vadd.f32 %v241, %v213
        %v246 = vadd.f32 %v242, %v214
        %v247 = vadd.f32 %v243, %v215
        %v248 = vadd.f32 %v232, %v177
        %v249 = vadd.f32 %v233, %v178
        %v250 = vadd.f32 %v234, %v179
        %v251 = vadd.f32 %v235, %v180
        %v252 = vadd.f32 %v248, %v236
        %v253 = vadd.f32 %v249, %v237
        %v254 = vadd.f32 %v250, %v238
        %v255 = vadd.f32 %v251, %v239
        %v256 = vmul.f32 %v208, %v208
        %v257 = vmul.f32 %v209, %v209
        %v258 = vmul.f32 %v210, %v210
        %v259 = vmul.f32 %v211, %v211
        %v260 = vmul.f32 %v173, %v173
        %v261 = vmul.f32 %v174, %v174
        %v262 = vmul.f32 %v175, %v175
        %v263 = vmul.f32 %v176, %v176
        %v264 = vadd.f32 %v256, %v260
        %v265 = vadd.f32 %v257, %v261
        %v266 = vadd.f32 %v258, %v262
        %v267 = vadd.f32 %v259, %v263
        %v268 = vmul.f32 %v212, %v212
        %v269 = vmul.f32 %v213, %v213
        %v270 = vmul.f32 %v214, %v214
        %v271 = vmul.f32 %v215, %v215
        %v272 = vadd.f32 %v264, %v268
        %v273 = vadd.f32 %v265, %v269
        %v274 = vadd.f32 %v266, %v270
        %v275 = vadd.f32 %v267, %v271
        %v276 = vmul.f32 %v232, %v232
        %v277 = vmul.f32 %v233, %v233
        %v278 = vmul.f32 %v234, %v234
        %v279 = vmul.f32 %v235, %v235
        %v280 = vmul.f32 %v177, %v177
        %v281 = vmul.f32 %v178, %v178
        %v282 = vmul.f32 %v179, %v179
        %v283 = vmul.f32 %v180, %v180
        %v284 = vadd.f32 %v276, %v280
        %v285 = vadd.f32 %v277, %v281
        %v286 = vadd.f32 %v278, %v282
        %v287 = vadd.f32 %v279, %v283
        %v288 = vmul.f32 %v236, %v236
        %v289 = vmul.f32 %v237, %v237
        %v290 = vmul.f32 %v238, %v238
        %v291 = vmul.f32 %v239, %v239
        %v292 = vadd.f32 %v284, %v288
        %v293 = vadd.f32 %v285, %v289
        %v294 = vadd.f32 %v286, %v290
        %v295 = vadd.f32 %v287, %v291
        %v296 = vmul.f32 %v208, %v232
        %v297 = vmul.f32 %v209, %v233
        %v298 = vmul.f32 %v210, %v234
        %v299 = vmul.f32 %v211, %v235
        %v300 = vmul.f32 %v173, %v177
        %v301 = vmul.f32 %v174, %v178
        %v302 = vmul.f32 %v175, %v179
        %v303 = vmul.f32 %v176, %v180
        %v304 = vadd.f32 %v296, %v300
        %v305 = vadd.f32 %v297, %v301
        %v306 = vadd.f32 %v298, %v302
        %v307 = vadd.f32 %v299, %v303
        %v308 = vmul.f32 %v212, %v236
        %v309 = vmul.f32 %v213, %v237
        %v310 = vmul.f32 %v214, %v238
        %v311 = vmul.f32 %v215, %v239
        %v312 = vadd.f32 %v304, %v308
        %v313 = vadd.f32 %v305, %v309
        %v314 = vadd.f32 %v306, %v310
        %v315 = vadd.f32 %v307, %v311
        %v316 = vrot.slane %v244, 7
        %v317 = vrot.slane %v246, 7
        %v318 = vrot.slane %v245, 7
        %v319 = vrot.slane %v247, 7
        %vm320 = vcmp.lt.s32.totalorder %v184, 1
        %v321 = vsel %vm320, %v316, %v318
        %v322 = vsel %vm320, %v317, %v319
        %v323 = vsel %vm320, %v318, %v316
        %v324 = vsel %vm320, %v319, %v317
        %v325 = vrot.slane %v244, 1
        %v326 = vrot.slane %v246, 1
        %v327 = vrot.slane %v245, 1
        %v328 = vrot.slane %v247, 1
        %vm329 = vcmp.lt.s32.totalorder %v184, 7
        %v330 = vsel %vm329, %v325, %v327
        %v331 = vsel %vm329, %v326, %v328
        %v332 = vsel %vm329, %v327, %v325
        %v333 = vsel %vm329, %v328, %v326
        %v334 = vsel %vm188, %v330, %v323
        %v335 = vsel %vm189, %v332, %v321
        %v336 = vsel %vm188, %v331, %v324
        %v337 = vsel %vm189, %v333, %v322
        %v338 = vsel %vm190, %v323, %v330
        %v339 = vsel %vm191, %v321, %v332
        %v340 = vsel %vm190, %v324, %v331
        %v341 = vsel %vm191, %v322, %v333
        %v342 = vadd.f32 %v334, %v244
        %v343 = vadd.f32 %v335, %v245
        %v344 = vadd.f32 %v336, %v246
        %v345 = vadd.f32 %v337, %v247
        %v346 = vadd.f32 %v342, %v338
        %v347 = vadd.f32 %v343, %v339
        %v348 = vadd.f32 %v344, %v340
        %v349 = vadd.f32 %v345, %v341
        %v350 = vrot.slane %v252, 7
        %v351 = vrot.slane %v254, 7
        %v352 = vrot.slane %v253, 7
        %v353 = vrot.slane %v255, 7
        %v354 = vsel %vm320, %v350, %v352
        %v355 = vsel %vm320, %v351, %v353
        %v356 = vsel %vm320, %v352, %v350
        %v357 = vsel %vm320, %v353, %v351
        %v358 = vrot.slane %v252, 1
        %v359 = vrot.slane %v254, 1
        %v360 = vrot.slane %v253, 1
        %v361 = vrot.slane %v255, 1
        %v362 = vsel %vm329, %v358, %v360
        %v363 = vsel %vm329, %v359, %v361
        %v364 = vsel %vm329, %v360, %v358
        %v365 = vsel %vm329, %v361, %v359
        %v366 = vsel %vm188, %v362, %v356
        %v367 = vsel %vm189, %v364, %v354
        %v368 = vsel %vm188, %v363, %v357
        %v369 = vsel %vm189, %v365, %v355
        %v370 = vsel %vm190, %v356, %v362
        %v371 = vsel %vm191, %v354, %v364
        %v372 = vsel %vm190, %v357, %v363
        %v373 = vsel %vm191, %v355, %v365
        %v374 = vadd.f32 %v366, %v252
        %v375 = vadd.f32 %v367, %v253
        %v376 = vadd.f32 %v368, %v254
        %v377 = vadd.f32 %v369, %v255
        %v378 = vadd.f32 %v374, %v370
        %v379 = vadd.f32 %v375, %v371
        %v380 = vadd.f32 %v376, %v372
        %v381 = vadd.f32 %v377, %v373
        %v382 = vrot.slane %v272, 7
        %v383 = vrot.slane %v274, 7
        %v384 = vrot.slane %v273, 7
        %v385 = vrot.slane %v275, 7
        %v386 = vsel %vm320, %v382, %v384
        %v387 = vsel %vm320, %v383, %v385
        %v388 = vsel %vm320, %v384, %v382
        %v389 = vsel %vm320, %v385, %v383
        %v390 = vrot.slane %v272, 1
        %v391 = vrot.slane %v274, 1
        %v392 = vrot.slane %v273, 1
        %v393 = vrot.slane %v275, 1
        %v394 = vsel %vm329, %v390, %v392
        %v395 = vsel %vm329, %v391, %v393
        %v396 = vsel %vm329, %v392, %v390
        %v397 = vsel %vm329, %v393, %v391
        %v398 = vsel %vm188, %v394, %v388
        %v399 = vsel %vm189, %v396, %v386
        %v400 = vsel %vm188, %v395, %v389
        %v401 = vsel %vm189, %v397, %v387
        %v402 = vsel %vm190, %v388, %v394
        %v403 = vsel %vm191, %v386, %v396
        %v404 = vsel %vm190, %v389, %v395
        %v405 = vsel %vm191, %v387, %v397
        %v406 = vadd.f32 %v398, %v272
        %v407 = vadd.f32 %v399, %v273
        %v408 = vadd.f32 %v400, %v274
        %v409 = vadd.f32 %v401, %v275
        %v410 = vadd.f32 %v406, %v402
        %v411 = vadd.f32 %v407, %v403
        %v412 = vadd.f32 %v408, %v404
        %v413 = vadd.f32 %v409, %v405
        %v414 = vrot.slane %v292, 7
        %v415 = vrot.slane %v294, 7
        %v416 = vrot.slane %v293, 7
        %v417 = vrot.slane %v295, 7
        %v418 = vsel %vm320, %v414, %v416
        %v419 = vsel %vm320, %v415, %v417
        %v420 = vsel %vm320, %v416, %v414
        %v421 = vsel %vm320, %v417, %v415
        %v422 = vrot.slane %v292, 1
        %v423 = vrot.slane %v294, 1
        %v424 = vrot.slane %v293, 1
        %v425 = vrot.slane %v295, 1
        %v426 = vsel %vm329, %v422, %v424
        %v427 = vsel %vm329, %v423, %v425
        %v428 = vsel %vm329, %v424, %v422
        %v429 = vsel %vm329, %v425, %v423
        %v430 = vsel %vm188, %v426, %v420
        %v431 = vsel %vm189, %v428, %v418
        %v432 = vsel %vm188, %v427, %v421
        %v433 = vsel %vm189, %v429, %v419
        %v434 = vsel %vm190, %v420, %v426
        %v435 = vsel %vm191, %v418, %v428
        %v436 = vsel %vm190, %v421, %v427
        %v437 = vsel %vm191, %v419, %v429
        %v438 = vadd.f32 %v430, %v292
        %v439 = vadd.f32 %v431, %v293
        %v440 = vadd.f32 %v432, %v294
        %v441 = vadd.f32 %v433, %v295
        %v442 = vadd.f32 %v438, %v434
        %v443 = vadd.f32 %v439, %v435
        %v444 = vadd.f32 %v440, %v436
        %v445 = vadd.f32 %v441, %v437
        %v446 = vrot.slane %v312, 7
        %v447 = vrot.slane %v314, 7
        %v448 = vrot.slane %v313, 7
        %v449 = vrot.slane %v315, 7
        %v450 = vsel %vm320, %v446, %v448
        %v451 = vsel %vm320, %v447, %v449
        %v452 = vsel %vm320, %v448, %v446
        %v453 = vsel %vm320, %v449, %v447
        %v454 = vrot.slane %v312, 1
        %v455 = vrot.slane %v314, 1
        %v456 = vrot.slane %v313, 1
        %v457 = vrot.slane %v315, 1
        %v458 = vsel %vm329, %v454, %v456
        %v459 = vsel %vm329, %v455, %v457
        %v460 = vsel %vm329, %v456, %v454
        %v461 = vsel %vm329, %v457, %v455
        %v462 = vsel %vm188, %v458, %v452
        %v463 = vsel %vm189, %v460, %v450
        %v464 = vsel %vm188, %v459, %v453
        %v465 = vsel %vm189, %v461, %v451
        %v466 = vsel %vm190, %v452, %v458
        %v467 = vsel %vm191, %v450, %v460
        %v468 = vsel %vm190, %v453, %v459
        %v469 = vsel %vm191, %v451, %v461
        %v470 = vadd.f32 %v462, %v312
        %v471 = vadd.f32 %v463, %v313
        %v472 = vadd.f32 %v464, %v314
        %v473 = vadd.f32 %v465, %v315
        %v474 = vadd.f32 %v470, %v466
        %v475 = vadd.f32 %v471, %v467
        %v476 = vadd.f32 %v472, %v468
        %v477 = vadd.f32 %v473, %v469
        %v478 = vmul.f32 %v346, %v378
        %v479 = vmul.f32 %v347, %v379
        %v480 = vmul.f32 %v348, %v380
        %v481 = vmul.f32 %v349, %v381
        %v482 = vmul.f32 %v346, %v346
        %v483 = vmul.f32 %v347, %v347
        %v484 = vmul.f32 %v348, %v348
        %v485 = vmul.f32 %v349, %v349
        %v486 = vmul.f32 %v378, %v378
        %v487 = vmul.f32 %v379, %v379
        %v488 = vmul.f32 %v380, %v380
        %v489 = vmul.f32 %v381, %v381
        %v490 = vmul.f32 %v478, 2.0
        %v491 = vmul.f32 %v479, 2.0
        %v492 = vmul.f32 %v480, 2.0
        %v493 = vmul.f32 %v481, 2.0
        %v494 = vadd.f32 %v490, 0.0081
        %v495 = vadd.f32 %v491, 0.0081
        %v496 = vadd.f32 %v492, 0.0081
        %v497 = vadd.f32 %v493, 0.0081
        %v498 = vmul.f32 %v474, 9.0
        %v499 = vmul.f32 %v475, 9.0
        %v500 = vmul.f32 %v476, 9.0
        %v501 = vmul.f32 %v477, 9.0
        %v502 = vsub.f32 %v498, %v478
        %v503 = vsub.f32 %v499, %v479
        %v504 = vsub.f32 %v500, %v480
        %v505 = vsub.f32 %v501, %v481
        %v506 = vmul.f32 %v502, 2.0
        %v507 = vmul.f32 %v503, 2.0
        %v508 = vmul.f32 %v504, 2.0
        %v509 = vmul.f32 %v505, 2.0
        %v510 = vadd.f32 %v506, 0.0729
        %v511 = vadd.f32 %v507, 0.0729
        %v512 = vadd.f32 %v508, 0.0729
        %v513 = vadd.f32 %v509, 0.0729
        %v514 = vmul.f32 %v494, %v510
        %v515 = vmul.f32 %v495, %v511
        %v516 = vmul.f32 %v496, %v512
        %v517 = vmul.f32 %v497, %v513
        %v518 = vadd.f32 %v482, %v486
        %v519 = vadd.f32 %v483, %v487
        %v520 = vadd.f32 %v484, %v488
        %v521 = vadd.f32 %v485, %v489
        %v522 = vadd.f32 %v518, 0.0081
        %v523 = vadd.f32 %v519, 0.0081
        %v524 = vadd.f32 %v520, 0.0081
        %v525 = vadd.f32 %v521, 0.0081
        %v526 = vadd.f32 %v410, %v442
        %v527 = vadd.f32 %v411, %v443
        %v528 = vadd.f32 %v412, %v444
        %v529 = vadd.f32 %v413, %v445
        %v530 = vmul.f32 %v526, 9.0
        %v531 = vmul.f32 %v527, 9.0
        %v532 = vmul.f32 %v528, 9.0
        %v533 = vmul.f32 %v529, 9.0
        %v534 = vsub.f32 %v530, %v482
        %v535 = vsub.f32 %v531, %v483
        %v536 = vsub.f32 %v532, %v484
        %v537 = vsub.f32 %v533, %v485
        %v538 = vsub.f32 %v534, %v486
        %v539 = vsub.f32 %v535, %v487
        %v540 = vsub.f32 %v536, %v488
        %v541 = vsub.f32 %v537, %v489
        %v542 = vadd.f32 %v538, 0.0729
        %v543 = vadd.f32 %v539, 0.0729
        %v544 = vadd.f32 %v540, 0.0729
        %v545 = vadd.f32 %v541, 0.0729
        %v546 = vmul.f32 %v522, %v542
        %v547 = vmul.f32 %v523, %v543
        %v548 = vmul.f32 %v524, %v544
        %v549 = vmul.f32 %v525, %v545
        %v550 = vrcp.pop %v546
        %v551 = vrcp.pop %v547
        %v552 = vrcp.pop %v548
        %v553 = vrcp.pop %v549
        %v554 = vmul.f32 %v546, %v550
        %v555 = vmul.f32 %v547, %v551
        %v556 = vmul.f32 %v548, %v552
        %v557 = vmul.f32 %v549, %v553
        %v558 = vsub.f32 2.0, %v554
        %v559 = vsub.f32 2.0, %v555
        %v560 = vsub.f32 2.0, %v556
        %v561 = vsub.f32 2.0, %v557
        %v562 = vmul.f32 %v550, %v558
        %v563 = vmul.f32 %v551, %v559
        %v564 = vmul.f32 %v552, %v560
        %v565 = vmul.f32 %v553, %v561
        %v566 = vmul.f32 %v514, %v562
        %v567 = vmul.f32 %v515, %v563
        %v568 = vmul.f32 %v516, %v564
        %v569 = vmul.f32 %v517, %v565
        %v570 = vsub.f32 1.0, %v566
        %v571 = vsub.f32 1.0, %v567
        %v572 = vsub.f32 1.0, %v568
        %v573 = vsub.f32 1.0, %v569
        %v574 = vmul.f32 %v570, 0.5
        %v575 = vmul.f32 %v571, 0.5
        %v576 = vmul.f32 %v572, 0.5
        %v577 = vmul.f32 %v573, 0.5
        %v578 = vmax.f32 %v574, 0.0
        %v579 = vmax.f32 %v575, 0.0
        %v580 = vmax.f32 %v576, 0.0
        %v581 = vmax.f32 %v577, 0.0
        %v582 = vmin.f32 %v578, 1.0
        %v583 = vmin.f32 %v579, 1.0
        %v584 = vmin.f32 %v580, 1.0
        %v585 = vmin.f32 %v581, 1.0
        %586 = vst [vmem:[%s157] sm:$0xff] %v582
        %587 = vst [vmem:[%s157 + $0x8] sm:$0xff] %v583
        %588 = vst [vmem:[%s157 + $0x10] sm:$0xff] %v584
        %589 = vst [vmem:[%s157 + $0x18] sm:$0xff] %v585
        %s590 = sand.u32 %s76, 1
        %s591 = scalar_lea.sflag [#allocation3], %s590
        %s592 = sand.u32 %s76, 1
        %s593 = smul.addr %s592, 32
        %s594 = scalar_lea.vmem [#allocation2], %s593
        // Predicated region
        $region29: #{ssim_loss.1} parent=27 // pred_check
          %p595 = pneg %p86
        $region30: #{ssim_loss.1} parent=27 // pred_check_branch
          %597 = sbr.rel (%p595) target = $region32
        $region31: #{ssim_loss.1} parent=27 // pred_region
          %s598 = smul.u32 2, %s16
          %s600 = ssub.s32 512, 512
          %601 = vsyncadd %s591, %s600
          %s602 = smul.addr %s598, 2
          %s603 = smul.addr %s602, 128
          %s604 = scalar_lea.hbm %s2, %s603
          %s605 = sshll.u32 %s594, 4
          %s606 = int_to_ptr.vmem [resolvable:$true] %s605
          %611 = dma.vmem_to_hbm [thread:$0]  %s606, 512, %s604, %s591, 128, 128, 8
        $region32: #{ssim_loss.1} parent=27 // pred_fallthru
          _
      $region28: #{ssim_loss.1} parent=5 // pred_fallthru
        _
      %p612 = scmp.le.s32.totalorder 2, %s11
      // Predicated region
      $region33: #{ssim_loss.1} parent=5 // pred_check
        %p613 = pneg %p612
      $region34: #{ssim_loss.1} parent=5 // pred_check_branch
        %615 = sbr.rel (%p613) target = $region36
      $region35: #{ssim_loss.1} parent=5 // pred_region
        %s616 = ssub.s32 %s11, 2
        // Predicated region
        $region37: #{ssim_loss.1} parent=35 // pred_check
          %p617 = pneg %p92
        $region38: #{ssim_loss.1} parent=35 // pred_check_branch
          %619 = sbr.rel (%p617) target = $region40
        $region39: #{ssim_loss.1} parent=35 // pred_region
          %s620 = sand.u32 %s77, 1
          %s621 = scalar_lea.sflag [#allocation3], %s620
          %s622 = sand.u32 %s77, 1
          %s623 = smul.addr %s622, 32
          %s624 = scalar_lea.vmem [#allocation2], %s623
          %625 = dma.done %s621, 512
        $region40: #{ssim_loss.1} parent=35 // pred_fallthru
          _
      $region36: #{ssim_loss.1} parent=5 // pred_fallthru
        _
    $region6: #{ssim_loss.1} parent=1 // loop_footer
      %s15 = sadd.s32 1, %s11
    $region7: #{ssim_loss.1} parent=1 // loop_footer_branch
      %10 = sbr.rel target = $region3
    $region8: #{ssim_loss.1} parent=1 // loop_exit
      _
    %626 = vsyncpa [#allocation3], 1
    %s627 = scalar_lea.sflag [#allocation3], 1
    %628 = vsyncpa %s627, 1

</llo_original>
